<compile_context>
chip_gen: v5e
topology: v5e:2x2
jax: 0.10.0
libtpu: 0.0.40
codegen_flags: <defaults>
</compile_context>

<pallas_src>
import jax
import jax.numpy as jnp
from jax.experimental import pallas as pl
from jax.experimental.pallas import tpu as pltpu


# --------------------------------------------------------------------------- #
# Kernel
# --------------------------------------------------------------------------- #
def _critic_mlp_kernel(x_ref, w1_ref, b1_ref, w2_ref, b2_ref, w3t_ref, b3_ref,
                       o_ref):
    """One batch tile of the 2-hidden-layer critic MLP (output_dim == 1)."""
    wdt = w1_ref.dtype                        # f32, or bf16 when use_bf16=True

    # Layer 1: single merged (TB, feat) @ (feat, Hp) MXU matmul.
    h1 = jnp.dot(x_ref[...].astype(wdt), w1_ref[...],
                 preferred_element_type=jnp.float32)
    h1 = jnp.maximum(h1 + b1_ref[...], 0.0)                 # bias + ReLU in f32

    # Layer 2: (TB, Hp) @ (Hp, Hp).
    h2 = jnp.dot(h1.astype(wdt), w2_ref[...],
                 preferred_element_type=jnp.float32)
    h2 = jnp.maximum(h2 + b2_ref[...], 0.0)

    # Head (output_dim == 1): VPU broadcast-multiply + lane-sum — off the MXU.
    # Padded hidden lanes contribute exactly 0 (zero W3 columns and ReLU(0)=0).
    q = jnp.sum(h2 * w3t_ref[...], axis=-1, keepdims=True) + b3_ref[...]
    o_ref[...] = q.astype(o_ref.dtype)
    # TODO(synk): generalize the head to output_dim > 1 (lane-padded MXU dot).


# --------------------------------------------------------------------------- #
# One-time parameter preparation (hoisted out of the per-call path)
# --------------------------------------------------------------------------- #
def prepare_params(params, *, use_bf16=False):
    """Pad hidden width 64 -> 128 (numerically exact) and pre-transpose W3.

    Call once at init / whenever parameters change; the forward pass then only
    touches the Pallas call plus a fused concat/pad of the inputs.
    """
    w1, b1, w2, b2, w3, b3 = params
    feat, H = w1.shape
    out_dim = w3.shape[1]
    assert out_dim == 1, "kernel head is specialised to output_dim == 1 (module default)"

    Hp = max(128, pl.cdiv(H, 128) * 128)
    ph = Hp - H
    f32 = jnp.float32
    wdt = jnp.bfloat16 if use_bf16 else f32

    w1p = jnp.pad(w1.astype(f32), ((0, 0), (0, ph))).astype(wdt)      # (feat, Hp)
    b1p = jnp.pad(b1.reshape(1, -1).astype(f32), ((0, 0), (0, ph)))   # (1, Hp)
    w2p = jnp.pad(w2.astype(f32), ((0, ph), (0, ph))).astype(wdt)     # (Hp, Hp)
    b2p = jnp.pad(b2.reshape(1, -1).astype(f32), ((0, 0), (0, ph)))   # (1, Hp)
    w3t = jnp.pad(w3.astype(f32).T, ((0, 0), (0, ph)))                # (1, Hp) f32 (VPU head)
    b3p = b3.astype(f32).reshape(1, 1)                                # (1, 1)
    return (w1p, b1p, w2p, b2p, w3t, b3p)


# --------------------------------------------------------------------------- #
# Tiling / VMEM accounting
# --------------------------------------------------------------------------- #
_LANE = 128


def _tile_vmem_bytes(tb, feat):
    """Conservative, lane/sublane-padded f32 VMEM footprint for one grid step."""
    pad_l = lambda n: pl.cdiv(n, 128) * 128
    pad_s = lambda n: pl.cdiv(n, 8) * 8
    x_buf = tb * pad_l(feat) * 4                 # input tile lane-pads to 128
    out_buf = tb * 128 * 4                       # (tb, 1) output tile lane-pads to 128
    inter = 2 * tb * 128 * 4                     # h1 + h2 VMEM temporaries
    wts = (pad_s(feat) * 128                     # W1
           + 128 * 128                           # W2
           + 4 * 8 * 128) * 4                    # b1, b2, w3t, b3 (sublane-padded)
    return 2 * (x_buf + out_buf) + 2 * wts + inter   # inputs/outputs double-buffered


def _pick_batch_tile(B, feat, vmem_budget=12 << 20):
    """Pick TB (multiple of 128) and n_tiles: minimal batch padding, >=2 grid
    steps when possible (v7x megacore sharding), VMEM-safe per-tile footprint."""
    rows = pl.cdiv(B, _LANE)                     # 128-row groups after minimal padding

    cap_rows = 16                                # TB <= 2048
    while cap_rows > 1 and _tile_vmem_bytes(cap_rows * _LANE, feat) > vmem_budget:
        cap_rows //= 2

    if rows <= 1:
        return _LANE, 1

    lo = max(2, pl.cdiv(rows, cap_rows))         # >=2 tiles, honour the VMEM cap
    best = None
    for t in range(lo, min(rows, lo + 7) + 1):   # minimise padded work; ties -> fewer tiles
        tb_rows = pl.cdiv(rows, t)
        if tb_rows > cap_rows:
            continue
        n_tiles = pl.cdiv(rows, tb_rows)
        cand = (n_tiles * tb_rows, n_tiles, tb_rows)
        if best is None or cand < best:
            best = cand
    _, n_tiles, tb_rows = best
    return tb_rows * _LANE, n_tiles


# --------------------------------------------------------------------------- #
# Forward pass
# --------------------------------------------------------------------------- #
def state_action_function(states, actions, prepared_params):
    """Q(s, a) forward pass with a batch-tiled Pallas kernel (jit-friendly)."""
    w1p, b1p, w2p, b2p, w3t, b3p = prepared_params
    B = states.shape[0]
    feat = states.shape[1] + actions.shape[1]
    assert feat == w1p.shape[0]
    Hp = w1p.shape[1]
    out_dtype = states.dtype

    # Pack [states | actions] once so layer 1 is a single K=feat matmul
    # (the extra HBM bytes are fully hidden; DMA has large slack here).
    x = jnp.concatenate([states, actions], axis=-1).astype(jnp.float32)

    TB, n_tiles = _pick_batch_tile(B, feat)
    B_pad = TB * n_tiles
    if B_pad != B:
        x = jnp.pad(x, ((0, B_pad - B), (0, 0)))

    const = lambda arr: pl.BlockSpec(arr.shape, lambda i: (0, 0))
    param_bytes = sum(int(p.size) * p.dtype.itemsize for p in prepared_params)
    cost = pl.CostEstimate(
        flops=2 * B_pad * (feat * Hp + Hp * Hp + Hp),
        transcendentals=0,
        bytes_accessed=int(B_pad * (feat + 1) * 4 + param_bytes),
    )

    out = pl.pallas_call(
        _critic_mlp_kernel,
        out_shape=jax.ShapeDtypeStruct((B_pad, 1), out_dtype),
        grid=(n_tiles,),
        in_specs=[
            pl.BlockSpec((TB, feat), lambda i: (i, 0)),       # x tile (pipelined)
            const(w1p), const(b1p), const(w2p), const(b2p),   # weights: VMEM-resident
            const(w3t), const(b3p),
        ],
        out_specs=pl.BlockSpec((TB, 1), lambda i: (i, 0)),
        compiler_params=pltpu.CompilerParams(
            dimension_semantics=("parallel",),
            vmem_limit_bytes=int(min(32 << 20,
                                     max(16 << 20, 4 * _tile_vmem_bytes(TB, feat)))),
        ),
        cost_estimate=cost,
    )(x, w1p, b1p, w2p, b2p, w3t, b3p)

    return out[:B]


# --------------------------------------------------------------------------- #
# Init + reference (pure JAX) for validation
# --------------------------------------------------------------------------- #
def init_params(key, input_dim, action_dim, hidden_units=(64, 64), output_dim=1):
    """He (Kaiming) normal init, zero biases — mirrors he_weights_init_."""
    dims = [input_dim + action_dim, *hidden_units, output_dim]
    params = []
    for i in range(len(dims) - 1):
        key, sub = jax.random.split(key)
        fan_in, fan_out = dims[i], dims[i + 1]
        std = jnp.sqrt(2.0 / fan_in)
        w = jax.random.normal(sub, (fan_in, fan_out), dtype=jnp.float32) * std
        b = jnp.zeros((1, fan_out), dtype=jnp.float32)
        params.extend([w, b])
    return tuple(params)


def reference_forward(states, actions, params):
    w1, b1, w2, b2, w3, b3 = params
    x = jnp.concatenate([states, actions], axis=-1)
    h1 = jax.nn.relu(x @ w1 + b1)
    h2 = jax.nn.relu(h1 @ w2 + b2)
    return h2 @ w3 + b3


if __name__ == "__main__":
    INPUT_DIM, ACTION_DIM = 16, 8
    key = jax.random.PRNGKey(0)
    k_s, k_a, k_p = jax.random.split(key, 3)
    params = init_params(k_p, INPUT_DIM, ACTION_DIM)

    prepared = prepare_params(params)              # hoisted: pad/transpose once
    fwd = jax.jit(state_action_function)

    # Small case (single 128-row tile, heavy padding path).
    B = 2
    states = jax.random.normal(k_s, (B, INPUT_DIM), dtype=jnp.float32)
    actions = jax.random.normal(k_a, (B, ACTION_DIM), dtype=jnp.float32)
    q = jax.block_until_ready(fwd(states, actions, prepared))
    q_ref = reference_forward(states, actions, params)
    assert q.shape == (B, 1), q.shape
    assert jnp.allclose(q, q_ref, atol=1e-4, rtol=1e-4), (q, q_ref)

    # Multi-tile case (exercises the batch grid, >=2 grid steps, tail padding).
    B2 = 300
    k_s2, k_a2 = jax.random.split(k_s)
    states2 = jax.random.normal(k_s2, (B2, INPUT_DIM), dtype=jnp.float32)
    actions2 = jax.random.normal(k_a2, (B2, ACTION_DIM), dtype=jnp.float32)
    q2 = jax.block_until_ready(fwd(states2, actions2, prepared))
    q2_ref = reference_forward(states2, actions2, params)
    assert q2.shape == (B2, 1), q2.shape
    assert jnp.allclose(q2, q2_ref, atol=1e-4, rtol=1e-4)

    # Optional bf16-operand fast path (not bit-exact with f32) — smoke test only.
    prepared_bf16 = prepare_params(params, use_bf16=True)
    q3 = jax.block_until_ready(fwd(states2, actions2, prepared_bf16))
    assert q3.shape == (B2, 1) and bool(jnp.all(jnp.isfinite(q3)))

    print("KERNEL_OK")
</pallas_src>

<mosaic_0001>
module attributes {stable_mosaic.version = 11 : i64} {
  func.func @_critic_mlp_kernel(%arg0: i32, %arg1: memref<128x24xf32, #tpu.memory_space<vmem>>, %arg2: memref<24x128xf32, #tpu.memory_space<vmem>>, %arg3: memref<1x128xf32, #tpu.memory_space<vmem>>, %arg4: memref<128x128xf32, #tpu.memory_space<vmem>>, %arg5: memref<1x128xf32, #tpu.memory_space<vmem>>, %arg6: memref<1x128xf32, #tpu.memory_space<vmem>>, %arg7: memref<1x1xf32, #tpu.memory_space<vmem>>, %arg8: memref<128x1xf32, #tpu.memory_space<vmem>>) attributes {dimension_semantics = [#tpu.dimension_semantics<parallel>], iteration_bounds = array<i64: 1>, scalar_prefetch = 0 : i64, scratch_operands = 0 : i64, tpu.core_type = #tpu.core_type<tc>, window_params = [{transform_indices = @transform_0, window_bounds = array<i64: 128, 24>}, {pipeline_mode = #tpu.pipeline_mode<synchronous>, transform_indices = @transform_1, window_bounds = array<i64: 24, 128>}, {pipeline_mode = #tpu.pipeline_mode<synchronous>, transform_indices = @transform_2, window_bounds = array<i64: 1, 128>}, {pipeline_mode = #tpu.pipeline_mode<synchronous>, transform_indices = @transform_3, window_bounds = array<i64: 128, 128>}, {pipeline_mode = #tpu.pipeline_mode<synchronous>, transform_indices = @transform_4, window_bounds = array<i64: 1, 128>}, {pipeline_mode = #tpu.pipeline_mode<synchronous>, transform_indices = @transform_5, window_bounds = array<i64: 1, 128>}, {pipeline_mode = #tpu.pipeline_mode<synchronous>, transform_indices = @transform_6, window_bounds = array<i64: 1, 1>}, {transform_indices = @transform_7, window_bounds = array<i64: 128, 1>}]} {
    %c0 = arith.constant 0 : index
    %c0_0 = arith.constant 0 : index
    %0 = vector.load %arg1[%c0, %c0_0] : memref<128x24xf32, #tpu.memory_space<vmem>>, vector<128x24xf32>
    %c0_1 = arith.constant 0 : index
    %c0_2 = arith.constant 0 : index
    %1 = vector.load %arg2[%c0_1, %c0_2] : memref<24x128xf32, #tpu.memory_space<vmem>>, vector<24x128xf32>
    %cst = arith.constant dense<0.000000e+00> : vector<128x128xf32>
    %2 = tpu.matmul %0, %1, %cst {dimension_numbers = #tpu.dot_dimension_numbers<[1], [0], [0], [1], [0, 0, 1, 1], [], []>} : vector<128x24xf32>, vector<24x128xf32>, vector<128x128xf32> -> vector<128x128xf32>
    %c0_3 = arith.constant 0 : index
    %c0_4 = arith.constant 0 : index
    %3 = vector.load %arg3[%c0_3, %c0_4] : memref<1x128xf32, #tpu.memory_space<vmem>>, vector<1x128xf32>
    %4 = vector.broadcast %3 : vector<1x128xf32> to vector<128x128xf32>
    %5 = arith.addf %2, %4 : vector<128x128xf32>
    %cst_5 = arith.constant 0.000000e+00 : f32
    %6 = vector.broadcast %cst_5 : f32 to vector<128x128xf32>
    %7 = arith.maximumf %5, %6 : vector<128x128xf32>
    %c0_6 = arith.constant 0 : index
    %c0_7 = arith.constant 0 : index
    %8 = vector.load %arg4[%c0_6, %c0_7] : memref<128x128xf32, #tpu.memory_space<vmem>>, vector<128x128xf32>
    %cst_8 = arith.constant dense<0.000000e+00> : vector<128x128xf32>
    %9 = tpu.matmul %7, %8, %cst_8 {dimension_numbers = #tpu.dot_dimension_numbers<[1], [0], [0], [1], [0, 0, 1, 1], [], []>} : vector<128x128xf32>, vector<128x128xf32>, vector<128x128xf32> -> vector<128x128xf32>
    %c0_9 = arith.constant 0 : index
    %c0_10 = arith.constant 0 : index
    %10 = vector.load %arg5[%c0_9, %c0_10] : memref<1x128xf32, #tpu.memory_space<vmem>>, vector<1x128xf32>
    %11 = vector.broadcast %10 : vector<1x128xf32> to vector<128x128xf32>
    %12 = arith.addf %9, %11 : vector<128x128xf32>
    %cst_11 = arith.constant 0.000000e+00 : f32
    %13 = vector.broadcast %cst_11 : f32 to vector<128x128xf32>
    %14 = arith.maximumf %12, %13 : vector<128x128xf32>
    %c0_12 = arith.constant 0 : index
    %c0_13 = arith.constant 0 : index
    %15 = vector.load %arg6[%c0_12, %c0_13] : memref<1x128xf32, #tpu.memory_space<vmem>>, vector<1x128xf32>
    %16 = vector.broadcast %15 : vector<1x128xf32> to vector<128x128xf32>
    %17 = arith.mulf %14, %16 : vector<128x128xf32>
    %cst_14 = arith.constant dense<0.000000e+00> : vector<128xf32>
    %18 = vector.multi_reduction <add>, %17, %cst_14 [1] : vector<128x128xf32> to vector<128xf32>
    %19 = vector.shape_cast %18 : vector<128xf32> to vector<128x1xf32>
    %c0_15 = arith.constant 0 : index
    %c0_16 = arith.constant 0 : index
    %20 = vector.load %arg7[%c0_15, %c0_16] : memref<1x1xf32, #tpu.memory_space<vmem>>, vector<1x1xf32>
    %21 = vector.broadcast %20 : vector<1x1xf32> to vector<128x1xf32>
    %22 = arith.addf %19, %21 : vector<128x1xf32>
    %c0_17 = arith.constant 0 : index
    %c0_18 = arith.constant 0 : index
    %23 = vector.load %arg8[%c0_17, %c0_18] : memref<128x1xf32, #tpu.memory_space<vmem>>, vector<128x1xf32>
    tpu.vector_store %arg8[%c0_17, %c0_18], %22 {strides = array<i32>} : memref<128x1xf32, #tpu.memory_space<vmem>>, vector<128x1xf32>,
    return
  }
  func.func @transform_0(%arg0: i32) -> (i32, i32) {
    %c0_i32 = arith.constant 0 : i32
    %c0_i32_0 = arith.constant 0 : i32
    return %arg0, %c0_i32 : i32, i32
  }
  func.func @transform_1(%arg0: i32) -> (i32, i32) {
    %c0_i32 = arith.constant 0 : i32
    %c0_i32_0 = arith.constant 0 : i32
    %c0_i32_1 = arith.constant 0 : i32
    return %c0_i32, %c0_i32_0 : i32, i32
  }
  func.func @transform_2(%arg0: i32) -> (i32, i32) {
    %c0_i32 = arith.constant 0 : i32
    %c0_i32_0 = arith.constant 0 : i32
    %c0_i32_1 = arith.constant 0 : i32
    return %c0_i32, %c0_i32_0 : i32, i32
  }
  func.func @transform_3(%arg0: i32) -> (i32, i32) {
    %c0_i32 = arith.constant 0 : i32
    %c0_i32_0 = arith.constant 0 : i32
    %c0_i32_1 = arith.constant 0 : i32
    return %c0_i32, %c0_i32_0 : i32, i32
  }
  func.func @transform_4(%arg0: i32) -> (i32, i32) {
    %c0_i32 = arith.constant 0 : i32
    %c0_i32_0 = arith.constant 0 : i32
    %c0_i32_1 = arith.constant 0 : i32
    return %c0_i32, %c0_i32_0 : i32, i32
  }
  func.func @transform_5(%arg0: i32) -> (i32, i32) {
    %c0_i32 = arith.constant 0 : i32
    %c0_i32_0 = arith.constant 0 : i32
    %c0_i32_1 = arith.constant 0 : i32
    return %c0_i32, %c0_i32_0 : i32, i32
  }
  func.func @transform_6(%arg0: i32) -> (i32, i32) {
    %c0_i32 = arith.constant 0 : i32
    %c0_i32_0 = arith.constant 0 : i32
    %c0_i32_1 = arith.constant 0 : i32
    return %c0_i32, %c0_i32_0 : i32, i32
  }
  func.func @transform_7(%arg0: i32) -> (i32, i32) {
    %c0_i32 = arith.constant 0 : i32
    %c0_i32_0 = arith.constant 0 : i32
    return %arg0, %c0_i32 : i32, i32
  }
}

</mosaic_0001>

<llo_original>
// kernel: state_action_function.1
$region0: #{state_action_function.1}
  #allocation0 [shape = 'u32[]', space=smem, size = 0x4, offset = 0x4, fixed_abs, tag = 'smem constant byte address 0x4 - core index']
  #allocation1 [shape = 'u32[72,128]{1,0:T(1,128)}', space=vmem, size = 0x9000, scoped, tag = 'internal scratch']
  #allocation2 [shape = 'f32[1,1]{1,0:T(1,128)S(1)}', space=vmem, size = 0x200, scoped, tag = 'scoped memory for state_action_function.1']
  %s0 = inlined_call_operand.vmem [shape: f32[128,24], index: 0, kind: input, shape index: {}]
  %s1 = inlined_call_operand.hbm [shape: f32[24,128], index: 1, kind: input, shape index: {}]
  %s2 = inlined_call_operand.vmem [shape: f32[1,128], index: 2, kind: input, shape index: {}]
  %s3 = inlined_call_operand.vmem [shape: f32[128,128], index: 3, kind: input, shape index: {}]
  %s4 = inlined_call_operand.vmem [shape: f32[1,128], index: 4, kind: input, shape index: {}]
  %s5 = inlined_call_operand.vmem [shape: f32[1,128], index: 5, kind: input, shape index: {}]
  %s6 = inlined_call_operand.<no memory space> [shape: f32[1,1], index: 6, kind: input, shape index: {}]
  %s7 = inlined_call_operand.vmem [shape: f32[128,1], index: 7, kind: output, shape index: {}]
  %s8 = sld [smem:[#allocation0]]
  $region42: #{state_action_function.1} parent=0
    _
  %s10 = ssub.s32 1, %s8
  %s11 = scalar_select 0, %s10, %s8
  %v12 = vstv %s6
  %13 = vst [vmem:[#allocation2] sm:$0x1] %v12
  $region1: #{state_action_function.1} parent=0
    #allocation3 [shape = 'u8[12288]{0}', space=vmem, size = 0x3000, scoped, tag = 'input window, operand 1, single buffered']
    #allocation4 [shape = 's32[1]{0}', space=sflag, size = 0x4, scoped, tag = 'scoped memory for state_action_function.1']
    %14 = vsyncpa [#allocation4], 0
    // Predicated region
    $region2: #{state_action_function.1} parent=1 // pred_check
      _
    $region3: #{state_action_function.1} parent=1 // pred_check_branch
      %16 = sbr.rel (0) target = $region5
    $region4: #{state_action_function.1} parent=1 // pred_region
      _
    $region5: #{state_action_function.1} parent=1 // pred_fallthru
      _
    // Predicated region
    $region6: #{state_action_function.1} parent=1 // pred_check
      _
    $region7: #{state_action_function.1} parent=1 // pred_check_branch
      %18 = sbr.rel (0) target = $region9
    $region8: #{state_action_function.1} parent=1 // pred_region
      %20 = vsyncadd [#allocation4], 0
      %s21 = sshll.u32 %s1, 4
      %s22 = int_to_ptr.hbm [resolvable:$true] %s21
      %s23 = sshll.u32 [#allocation3], 4
      %s24 = int_to_ptr.vmem [resolvable:$true] %s23
      %29 = dma.hbm_to_vmem [thread:$0]  %s22, 384, %s24, [#allocation4], 128, 128, 8
    $region9: #{state_action_function.1} parent=1 // pred_fallthru
      _
    // Predicated region
    $region10: #{state_action_function.1} parent=1 // pred_check
      _
    $region11: #{state_action_function.1} parent=1 // pred_check_branch
      %31 = sbr.rel (0) target = $region13
    $region12: #{state_action_function.1} parent=1 // pred_region
      _
    $region13: #{state_action_function.1} parent=1 // pred_fallthru
      _
    // Predicated region
    $region14: #{state_action_function.1} parent=1 // pred_check
      _
    $region15: #{state_action_function.1} parent=1 // pred_check_branch
      %33 = sbr.rel (0) target = $region17
    $region16: #{state_action_function.1} parent=1 // pred_region
      _
    $region17: #{state_action_function.1} parent=1 // pred_fallthru
      _
    // Predicated region
    $region18: #{state_action_function.1} parent=1 // pred_check
      _
    $region19: #{state_action_function.1} parent=1 // pred_check_branch
      %35 = sbr.rel (0) target = $region21
    $region20: #{state_action_function.1} parent=1 // pred_region
      _
    $region21: #{state_action_function.1} parent=1 // pred_fallthru
      _
    // Predicated region
    $region22: #{state_action_function.1} parent=1 // pred_check
      _
    $region23: #{state_action_function.1} parent=1 // pred_check_branch
      %37 = sbr.rel (0) target = $region25
    $region24: #{state_action_function.1} parent=1 // pred_region
      _
    $region25: #{state_action_function.1} parent=1 // pred_fallthru
      _
    // Predicated region
    $region26: #{state_action_function.1} parent=1 // pred_check
      _
    $region27: #{state_action_function.1} parent=1 // pred_check_branch
      %39 = sbr.rel (0) target = $region29
    $region28: #{state_action_function.1} parent=1 // pred_region
      _
    $region29: #{state_action_function.1} parent=1 // pred_fallthru
      _
    // Predicated region
    $region30: #{state_action_function.1} parent=1 // pred_check
      _
    $region31: #{state_action_function.1} parent=1 // pred_check_branch
      %41 = sbr.rel (0) target = $region33
    $region32: #{state_action_function.1} parent=1 // pred_region
      %43 = dma.done [#allocation4], 384
    $region33: #{state_action_function.1} parent=1 // pred_fallthru
      _
    %v44 = vld [vmem:[%s0] sm:$0xff]
    %v45 = vld [vmem:[%s0 + $0x8] sm:$0xff]
    %v46 = vld [vmem:[%s0 + $0x10] sm:$0xff]
    %v47 = vld [vmem:[%s0 + $0x18] sm:$0xff]
    %v48 = vld [vmem:[%s0 + $0x20] sm:$0xff]
    %v49 = vld [vmem:[%s0 + $0x28] sm:$0xff]
    %v50 = vld [vmem:[%s0 + $0x30] sm:$0xff]
    %v51 = vld [vmem:[%s0 + $0x38] sm:$0xff]
    %v52 = vld [vmem:[%s0 + $0x40] sm:$0xff]
    %v53 = vld [vmem:[%s0 + $0x48] sm:$0xff]
    %v54 = vld [vmem:[%s0 + $0x50] sm:$0xff]
    %v55 = vld [vmem:[%s0 + $0x58] sm:$0xff]
    %v56 = vld [vmem:[%s0 + $0x60] sm:$0xff]
    %v57 = vld [vmem:[%s0 + $0x68] sm:$0xff]
    %v58 = vld [vmem:[%s0 + $0x70] sm:$0xff]
    %v59 = vld [vmem:[%s0 + $0x78] sm:$0xff]
    %v60 = vld [vmem:[#allocation3] sm:$0xff]
    %v61 = vld [vmem:[#allocation3 + $0x8] sm:$0xff]
    %v62 = vld [vmem:[#allocation3 + $0x10] sm:$0xff]
    %v63 = vld [vmem:[%s2] sm:$0x1]
    %v65 = vperm.slane %v63, 0
    %vm67 = vcmask 195584
    %v69 = vsel %vm67, %v44, 0
    %v72 = vsel %vm67, %v45, 0
    %v75 = vsel %vm67, %v46, 0
    %v78 = vsel %vm67, %v47, 0
    %v81 = vsel %vm67, %v48, 0
    %v84 = vsel %vm67, %v49, 0
    %v87 = vsel %vm67, %v50, 0
    %v90 = vsel %vm67, %v51, 0
    %v93 = vsel %vm67, %v52, 0
    %v96 = vsel %vm67, %v53, 0
    %v99 = vsel %vm67, %v54, 0
    %v102 = vsel %vm67, %v55, 0
    %v105 = vsel %vm67, %v56, 0
    %v108 = vsel %vm67, %v57, 0
    %v111 = vsel %vm67, %v58, 0
    %v114 = vsel %vm67, %v59, 0
    %116 = vmatpush.msra.mxu0 0.0
    %117 = vmatpush.msra.mxu0 0.0
    %118 = vmatpush.msra.mxu0 0.0
    %119 = vmatpush.msra.mxu0 0.0
    %120 = vmatpush.msra.mxu0 0.0
    %121 = vmatpush.msra.mxu0 0.0
    %122 = vmatpush.msra.mxu0 0.0
    %123 = vmatpush.msra.mxu0 0.0
    %124 = vmatpush.msra.mxu0 0.0
    %125 = vmatpush.msra.mxu0 0.0
    %126 = vmatpush.msra.mxu0 0.0
    %127 = vmatpush.msra.mxu0 0.0
    %128 = vmatpush.msra.mxu0 0.0
    %129 = vmatpush.msra.mxu0 %v62
    %130 = vmatpush.msra.mxu0 %v61
    %131 = vmatpush.msra.mxu0 %v60
    %132 = vmatmul.f32.gmra.mxu0 %v69
    %v133 = vpop.f32.mrf.mxu0
    %v134 = vadd.f32 %v65, %v133
    %135 = vmatmul.f32.gmra.mxu0 %v72
    %v136 = vpop.f32.mrf.mxu0
    %v137 = vadd.f32 %v65, %v136
    %138 = vmatmul.f32.gmra.mxu0 %v75
    %v139 = vpop.f32.mrf.mxu0
    %v140 = vadd.f32 %v65, %v139
    %141 = vmatmul.f32.gmra.mxu0 %v78
    %v142 = vpop.f32.mrf.mxu0
    %v143 = vadd.f32 %v65, %v142
    %144 = vmatmul.f32.gmra.mxu0 %v81
    %v145 = vpop.f32.mrf.mxu0
    %v146 = vadd.f32 %v65, %v145
    %147 = vmatmul.f32.gmra.mxu0 %v84
    %v148 = vpop.f32.mrf.mxu0
    %v149 = vadd.f32 %v65, %v148
    %150 = vmatmul.f32.gmra.mxu0 %v87
    %v151 = vpop.f32.mrf.mxu0
    %v152 = vadd.f32 %v65, %v151
    %153 = vmatmul.f32.gmra.mxu0 %v90
    %v154 = vpop.f32.mrf.mxu0
    %v155 = vadd.f32 %v65, %v154
    %156 = vmatmul.f32.gmra.mxu0 %v93
    %v157 = vpop.f32.mrf.mxu0
    %v158 = vadd.f32 %v65, %v157
    %159 = vmatmul.f32.gmra.mxu0 %v96
    %v160 = vpop.f32.mrf.mxu0
    %v161 = vadd.f32 %v65, %v160
    %162 = vmatmul.f32.gmra.mxu0 %v99
    %v163 = vpop.f32.mrf.mxu0
    %v164 = vadd.f32 %v65, %v163
    %165 = vmatmul.f32.gmra.mxu0 %v102
    %v166 = vpop.f32.mrf.mxu0
    %v167 = vadd.f32 %v65, %v166
    %168 = vmatmul.f32.gmra.mxu0 %v105
    %v169 = vpop.f32.mrf.mxu0
    %v170 = vadd.f32 %v65, %v169
    %171 = vmatmul.f32.gmra.mxu0 %v108
    %v172 = vpop.f32.mrf.mxu0
    %v173 = vadd.f32 %v65, %v172
    %174 = vmatmul.f32.gmra.mxu0 %v111
    %v175 = vpop.f32.mrf.mxu0
    %v176 = vadd.f32 %v65, %v175
    %177 = vmatmul.f32.gmra.mxu0 %v114
    %v178 = vpop.f32.mrf.mxu0
    %v179 = vadd.f32 %v65, %v178
    %180 = vdwg.mxu0
    %v181 = vmax.f32 %v134, 0.0
    %v182 = vmax.f32 %v137, 0.0
    %v183 = vmax.f32 %v140, 0.0
    %v184 = vmax.f32 %v143, 0.0
    %v185 = vmax.f32 %v146, 0.0
    %v186 = vmax.f32 %v149, 0.0
    %v187 = vmax.f32 %v152, 0.0
    %v188 = vmax.f32 %v155, 0.0
    %v189 = vmax.f32 %v158, 0.0
    %v190 = vmax.f32 %v161, 0.0
    %v191 = vmax.f32 %v164, 0.0
    %v192 = vmax.f32 %v167, 0.0
    %v193 = vmax.f32 %v170, 0.0
    %v194 = vmax.f32 %v173, 0.0
    %v195 = vmax.f32 %v176, 0.0
    %v196 = vmax.f32 %v179, 0.0
    %v197 = vld [vmem:[%s3] sm:$0xff]
    %v198 = vld [vmem:[%s3 + $0x8] sm:$0xff]
    %v199 = vld [vmem:[%s3 + $0x10] sm:$0xff]
    %v200 = vld [vmem:[%s3 + $0x18] sm:$0xff]
    %v201 = vld [vmem:[%s3 + $0x20] sm:$0xff]
    %v202 = vld [vmem:[%s3 + $0x28] sm:$0xff]
    %v203 = vld [vmem:[%s3 + $0x30] sm:$0xff]
    %v204 = vld [vmem:[%s3 + $0x38] sm:$0xff]
    %v205 = vld [vmem:[%s3 + $0x40] sm:$0xff]
    %v206 = vld [vmem:[%s3 + $0x48] sm:$0xff]
    %v207 = vld [vmem:[%s3 + $0x50] sm:$0xff]
    %v208 = vld [vmem:[%s3 + $0x58] sm:$0xff]
    %v209 = vld [vmem:[%s3 + $0x60] sm:$0xff]
    %v210 = vld [vmem:[%s3 + $0x68] sm:$0xff]
    %v211 = vld [vmem:[%s3 + $0x70] sm:$0xff]
    %v212 = vld [vmem:[%s3 + $0x78] sm:$0xff]
    %v213 = vld [vmem:[%s4] sm:$0x1]
    %v215 = vperm.slane %v213, 0
    %217 = vmatpush.msra.mxu0 %v212
    %218 = vmatpush.msra.mxu0 %v211
    %219 = vmatpush.msra.mxu0 %v210
    %220 = vmatpush.msra.mxu0 %v209
    %221 = vmatpush.msra.mxu0 %v208
    %222 = vmatpush.msra.mxu0 %v207
    %223 = vmatpush.msra.mxu0 %v206
    %224 = vmatpush.msra.mxu0 %v205
    %225 = vmatpush.msra.mxu0 %v204
    %226 = vmatpush.msra.mxu0 %v203
    %227 = vmatpush.msra.mxu0 %v202
    %228 = vmatpush.msra.mxu0 %v201
    %229 = vmatpush.msra.mxu0 %v200
    %230 = vmatpush.msra.mxu0 %v199
    %231 = vmatpush.msra.mxu0 %v198
    %232 = vmatpush.msra.mxu0 %v197
    %233 = vmatmul.f32.gmra.mxu0 %v181
    %v234 = vpop.f32.mrf.mxu0
    %v235 = vadd.f32 %v215, %v234
    %236 = vmatmul.f32.gmra.mxu0 %v182
    %v237 = vpop.f32.mrf.mxu0
    %v238 = vadd.f32 %v215, %v237
    %239 = vmatmul.f32.gmra.mxu0 %v183
    %v240 = vpop.f32.mrf.mxu0
    %v241 = vadd.f32 %v215, %v240
    %242 = vmatmul.f32.gmra.mxu0 %v184
    %v243 = vpop.f32.mrf.mxu0
    %v244 = vadd.f32 %v215, %v243
    %245 = vmatmul.f32.gmra.mxu0 %v185
    %v246 = vpop.f32.mrf.mxu0
    %v247 = vadd.f32 %v215, %v246
    %248 = vmatmul.f32.gmra.mxu0 %v186
    %v249 = vpop.f32.mrf.mxu0
    %v250 = vadd.f32 %v215, %v249
    %251 = vmatmul.f32.gmra.mxu0 %v187
    %v252 = vpop.f32.mrf.mxu0
    %v253 = vadd.f32 %v215, %v252
    %254 = vmatmul.f32.gmra.mxu0 %v188
    %v255 = vpop.f32.mrf.mxu0
    %v256 = vadd.f32 %v215, %v255
    %257 = vmatmul.f32.gmra.mxu0 %v189
    %v258 = vpop.f32.mrf.mxu0
    %v259 = vadd.f32 %v215, %v258
    %260 = vmatmul.f32.gmra.mxu0 %v190
    %v261 = vpop.f32.mrf.mxu0
    %v262 = vadd.f32 %v215, %v261
    %263 = vmatmul.f32.gmra.mxu0 %v191
    %v264 = vpop.f32.mrf.mxu0
    %v265 = vadd.f32 %v215, %v264
    %266 = vmatmul.f32.gmra.mxu0 %v192
    %v267 = vpop.f32.mrf.mxu0
    %v268 = vadd.f32 %v215, %v267
    %269 = vmatmul.f32.gmra.mxu0 %v193
    %v270 = vpop.f32.mrf.mxu0
    %v271 = vadd.f32 %v215, %v270
    %272 = vmatmul.f32.gmra.mxu0 %v194
    %v273 = vpop.f32.mrf.mxu0
    %v274 = vadd.f32 %v215, %v273
    %275 = vmatmul.f32.gmra.mxu0 %v195
    %v276 = vpop.f32.mrf.mxu0
    %v277 = vadd.f32 %v215, %v276
    %278 = vmatmul.f32.gmra.mxu0 %v196
    %v279 = vpop.f32.mrf.mxu0
    %v280 = vadd.f32 %v215, %v279
    %281 = vdwg.mxu0
    %v282 = vmax.f32 %v235, 0.0
    %v283 = vmax.f32 %v238, 0.0
    %v284 = vmax.f32 %v241, 0.0
    %v285 = vmax.f32 %v244, 0.0
    %v286 = vmax.f32 %v247, 0.0
    %v287 = vmax.f32 %v250, 0.0
    %v288 = vmax.f32 %v253, 0.0
    %v289 = vmax.f32 %v256, 0.0
    %v290 = vmax.f32 %v259, 0.0
    %v291 = vmax.f32 %v262, 0.0
    %v292 = vmax.f32 %v265, 0.0
    %v293 = vmax.f32 %v268, 0.0
    %v294 = vmax.f32 %v271, 0.0
    %v295 = vmax.f32 %v274, 0.0
    %v296 = vmax.f32 %v277, 0.0
    %v297 = vmax.f32 %v280, 0.0
    %v298 = vld [vmem:[%s5] sm:$0x1]
    %v300 = vperm.slane %v298, 0
    %v302 = vmul.f32 %v282, %v300
    %v303 = vmul.f32 %v283, %v300
    %v304 = vmul.f32 %v284, %v300
    %v305 = vmul.f32 %v285, %v300
    %v306 = vmul.f32 %v286, %v300
    %v307 = vmul.f32 %v287, %v300
    %v308 = vmul.f32 %v288, %v300
    %v309 = vmul.f32 %v289, %v300
    %v310 = vmul.f32 %v290, %v300
    %v311 = vmul.f32 %v291, %v300
    %v312 = vmul.f32 %v292, %v300
    %v313 = vmul.f32 %v293, %v300
    %v314 = vmul.f32 %v294, %v300
    %v315 = vmul.f32 %v295, %v300
    %v316 = vmul.f32 %v296, %v300
    %v317 = vmul.f32 %v297, %v300
    %318 = vadd.xlane.f32.xlu0 %v302
    %v319 = vpop.xlane.xlu0 %318
    %320 = vadd.xlane.f32.xlu0 %v303
    %v321 = vpop.xlane.xlu0 %320
    %322 = vadd.xlane.f32.xlu0 %v304
    %v323 = vpop.xlane.xlu0 %322
    %324 = vadd.xlane.f32.xlu0 %v305
    %v325 = vpop.xlane.xlu0 %324
    %326 = vadd.xlane.f32.xlu0 %v306
    %v327 = vpop.xlane.xlu0 %326
    %328 = vadd.xlane.f32.xlu0 %v307
    %v329 = vpop.xlane.xlu0 %328
    %330 = vadd.xlane.f32.xlu0 %v308
    %v331 = vpop.xlane.xlu0 %330
    %332 = vadd.xlane.f32.xlu0 %v309
    %v333 = vpop.xlane.xlu0 %332
    %334 = vadd.xlane.f32.xlu0 %v310
    %v335 = vpop.xlane.xlu0 %334
    %336 = vadd.xlane.f32.xlu0 %v311
    %v337 = vpop.xlane.xlu0 %336
    %338 = vadd.xlane.f32.xlu0 %v312
    %v339 = vpop.xlane.xlu0 %338
    %340 = vadd.xlane.f32.xlu0 %v313
    %v341 = vpop.xlane.xlu0 %340
    %342 = vadd.xlane.f32.xlu0 %v314
    %v343 = vpop.xlane.xlu0 %342
    %344 = vadd.xlane.f32.xlu0 %v315
    %v345 = vpop.xlane.xlu0 %344
    %346 = vadd.xlane.f32.xlu0 %v316
    %v347 = vpop.xlane.xlu0 %346
    %348 = vadd.xlane.f32.xlu0 %v317
    %v349 = vpop.xlane.xlu0 %348
    %v350 = vld [vmem:[#allocation2] sm:$0x1]
    %v352 = vperm.slane %v350, 0
    %v354 = vadd.f32 %v319, %v352
    %v355 = vadd.f32 %v321, %v352
    %v356 = vadd.f32 %v323, %v352
    %v357 = vadd.f32 %v325, %v352
    %v358 = vadd.f32 %v327, %v352
    %v359 = vadd.f32 %v329, %v352
    %v360 = vadd.f32 %v331, %v352
    %v361 = vadd.f32 %v333, %v352
    %v362 = vadd.f32 %v335, %v352
    %v363 = vadd.f32 %v337, %v352
    %v364 = vadd.f32 %v339, %v352
    %v365 = vadd.f32 %v341, %v352
    %v366 = vadd.f32 %v343, %v352
    %v367 = vadd.f32 %v345, %v352
    %v368 = vadd.f32 %v347, %v352
    %v369 = vadd.f32 %v349, %v352
    %vm370 = vcmask 7168
    %371 = vst.msk [vmem:[%s7] sm:$0xff] %vm370, %v354
    %372 = vst.msk [vmem:[%s7 + $0x8] sm:$0xff] %vm370, %v355
    %373 = vst.msk [vmem:[%s7 + $0x10] sm:$0xff] %vm370, %v356
    %374 = vst.msk [vmem:[%s7 + $0x18] sm:$0xff] %vm370, %v357
    %375 = vst.msk [vmem:[%s7 + $0x20] sm:$0xff] %vm370, %v358
    %376 = vst.msk [vmem:[%s7 + $0x28] sm:$0xff] %vm370, %v359
    %377 = vst.msk [vmem:[%s7 + $0x30] sm:$0xff] %vm370, %v360
    %378 = vst.msk [vmem:[%s7 + $0x38] sm:$0xff] %vm370, %v361
    %379 = vst.msk [vmem:[%s7 + $0x40] sm:$0xff] %vm370, %v362
    %380 = vst.msk [vmem:[%s7 + $0x48] sm:$0xff] %vm370, %v363
    %381 = vst.msk [vmem:[%s7 + $0x50] sm:$0xff] %vm370, %v364
    %382 = vst.msk [vmem:[%s7 + $0x58] sm:$0xff] %vm370, %v365
    %383 = vst.msk [vmem:[%s7 + $0x60] sm:$0xff] %vm370, %v366
    %384 = vst.msk [vmem:[%s7 + $0x68] sm:$0xff] %vm370, %v367
    %385 = vst.msk [vmem:[%s7 + $0x70] sm:$0xff] %vm370, %v368
    %386 = vst.msk [vmem:[%s7 + $0x78] sm:$0xff] %vm370, %v369
    // Predicated region
    $region34: #{state_action_function.1} parent=1 // pred_check
      _
    $region35: #{state_action_function.1} parent=1 // pred_check_branch
      %388 = sbr.rel (0) target = $region37
    $region36: #{state_action_function.1} parent=1 // pred_region
      _
    $region37: #{state_action_function.1} parent=1 // pred_fallthru
      _
    // Predicated region
    $region38: #{state_action_function.1} parent=1 // pred_check
      _
    $region39: #{state_action_function.1} parent=1 // pred_check_branch
      %390 = sbr.rel (0) target = $region41
    $region40: #{state_action_function.1} parent=1 // pred_region
      _
    $region41: #{state_action_function.1} parent=1 // pred_fallthru
      _
    %391 = vsyncpa [#allocation4], 1

</llo_original>
